<compile_context>
chip_gen: v7x
topology: tpu7x:2x2x1
jax: 0.10.0
libtpu: 0.0.40
codegen_flags: <defaults>
</compile_context>

<pallas_src>
import functools
import math

import jax
import jax.numpy as jnp
from jax.experimental import pallas as pl
from jax.experimental.pallas import tpu as pltpu

LANE = 128


def _reverse_kl_kernel(s_ref, t_ref, o_ref, *, eps, hw, mask_tail):
    """One (image, spatial-chunk) tile.

    Input block is (1, C, bs, 128) on the aligned path or (1, C, T) on the
    ragged fallback.  The channel axis is leading (untiled), so the softmax /
    KL reduction over C is cheap work on dense lane-major slices.
    """
    j = pl.program_id(1)

    s = s_ref[0].astype(jnp.float32)   # (C, bs, 128) or (C, T) student logits
    t = t_ref[0].astype(jnp.float32)   # (C, bs, 128) or (C, T) teacher probs

    # log-softmax over channels; clamp(softmax, eps, 1) applied in log space
    # (log p <= 0, so only the lower clamp log(eps) is needed).
    m = jnp.max(s, axis=0, keepdims=True)
    sh = s - m
    lse = jnp.log(jnp.sum(jnp.exp(sh), axis=0, keepdims=True))
    log_p = jnp.maximum(sh - lse, jnp.float32(math.log(eps)))

    # Teacher soft targets are probabilities (<= 1): clamp(t, eps, 1) == max(t, eps).
    t = jnp.maximum(t, jnp.float32(eps))

    # Per-position reverse KL: sum_C t * (log t - log p).
    kl = jnp.sum(t * (jnp.log(t) - log_p), axis=0)   # (bs, 128) or (T,)

    if kl.ndim == 2:
        # Aligned path: lane-dense (bs, 128) tile.
        if mask_tail:  # only compiled in when the last block overhangs the array
            bs = kl.shape[0]
            row = j * bs + jax.lax.broadcasted_iota(jnp.int32, kl.shape, 0)
            col = jax.lax.broadcasted_iota(jnp.int32, kl.shape, 1)
            kl = jnp.where(row * LANE + col < hw, kl, 0.0)  # select; NaN-safe
        # Per-lane partials: sublane-only reduce + lane-dense (1,1,1,128) store
        # (no in-kernel cross-lane XLU tree, no sub-128-lane masked store).
        o_ref[...] = jnp.sum(kl, axis=0).reshape(o_ref.shape)
    else:
        # Ragged fallback: flat (T,) positions.
        size = kl.shape[0]
        kl = kl.reshape(1, size)
        if mask_tail:
            pos = j * size + jax.lax.broadcasted_iota(jnp.int32, kl.shape, 1)
            kl = jnp.where(pos < hw, kl, 0.0)
        o_ref[...] = jnp.sum(kl).reshape(o_ref.shape)


def _vmem_budget_bytes():
    """Generation-aware scoped-VMEM budget for this kernel's working set."""
    try:
        phys = int(pltpu.get_tpu_info().vmem_capacity_bytes)
    except Exception:
        phys = 64 * 1024 * 1024  # conservative default: v7x per-TensorCore VMEM
    # Both grid axes are "parallel": on megacore parts each TC holds its own
    # double-buffers, so stay well below the per-core physical capacity.
    # v5e/v6e (128 MiB phys) -> 32 MiB; v7x (64 MiB phys) -> ~25.6 MiB.
    return min(32 * 1024 * 1024, int(phys * 0.4))


def reverse_kl_loss(student_logits, teacher_soft_targets, eps=1e-8,
                    target_block_bytes=2 * 1024 * 1024):
    """student_logits, teacher_soft_targets: NCHW arrays (f32 or bf16). Scalar loss."""
    N, C, H, W = student_logits.shape
    HW = H * W
    M = N * HW
    itemsize = jnp.dtype(student_logits.dtype).itemsize

    budget = _vmem_budget_bytes()
    # VMEM bytes per row of 128 spatial positions:
    #   2 inputs x 2 pipeline buffers (input dtype) + ~6 block-sized f32 temps.
    row_vmem_bytes = C * LANE * (4 * itemsize + 6 * 4)
    rows_vmem_cap = max(8, (budget // row_vmem_bytes) // 8 * 8)
    # ~target_block_bytes of HBM per input block keeps mem-bound steps near the
    # roofline while amortizing the ~0.35us fixed per-step cost.
    rows_target = max(8, (target_block_bytes // (C * LANE * itemsize)) // 8 * 8)
    rows_cap = min(rows_target, rows_vmem_cap)

    cost = pl.CostEstimate(
        flops=10 * N * C * HW,
        transcendentals=2 * N * C * HW,
        bytes_accessed=2 * N * C * HW * itemsize + 4 * N * LANE,
    )
    cparams = pltpu.CompilerParams(
        dimension_semantics=("parallel", "parallel"),
        vmem_limit_bytes=int(budget),
    )

    if HW % LANE == 0:
        # Fast path: view NCHW as (N, C, rows, 128) -> lane-dense (bs, 128)
        # tiles with the small channel axis leading.
        rows_total = HW // LANE
        s = student_logits.reshape(N, C, rows_total, LANE)
        t = teacher_soft_targets.reshape(N, C, rows_total, LANE)

        if rows_total <= rows_cap:
            bs, mask_tail = rows_total, False
        else:
            # Prefer the largest multiple-of-8 divisor of rows_total in the top
            # half of the cap: fully dense DMAs, no edge block, no mask.
            bs = 0
            lo = max(8, (rows_cap // 2) // 8 * 8)
            for cand in range(rows_cap, lo - 1, -8):
                if rows_total % cand == 0:
                    bs = cand
                    break
            if bs:
                mask_tail = False
            else:
                # No good divisor: keep the large tile and mask the overhang of
                # the final block (Pallas does not shift edge-block windows).
                bs, mask_tail = rows_cap, True
        num_j = pl.cdiv(rows_total, bs)

        kernel = functools.partial(_reverse_kl_kernel, eps=float(eps), hw=HW,
                                   mask_tail=mask_tail)
        partials = pl.pallas_call(
            kernel,
            out_shape=jax.ShapeDtypeStruct((N, num_j, 1, LANE), jnp.float32),
            grid_spec=pltpu.PrefetchScalarGridSpec(
                num_scalar_prefetch=0,
                grid=(N, num_j),
                in_specs=[
                    pl.BlockSpec((1, C, bs, LANE), lambda n, j: (n, 0, j, 0)),
                    pl.BlockSpec((1, C, bs, LANE), lambda n, j: (n, 0, j, 0)),
                ],
                out_specs=pl.BlockSpec((1, 1, 1, LANE), lambda n, j: (n, j, 0, 0)),
            ),
            compiler_params=cparams,
            cost_estimate=cost,
        )(s, t)
    else:
        # Ragged H*W: stream the flat (N, C, HW) view directly (no jnp.pad HBM
        # round trip in front of a bandwidth-bound kernel); mask the tail in-kernel.
        s = student_logits.reshape(N, C, HW)
        t = teacher_soft_targets.reshape(N, C, HW)
        t_cap = rows_cap * LANE
        if HW <= t_cap:
            tile, num_j, mask_tail = HW, 1, False
        else:
            tile = t_cap
            num_j = pl.cdiv(HW, tile)
            mask_tail = True

        kernel = functools.partial(_reverse_kl_kernel, eps=float(eps), hw=HW,
                                   mask_tail=mask_tail)
        partials = pl.pallas_call(
            kernel,
            out_shape=jax.ShapeDtypeStruct((N, num_j, 1, 1), jnp.float32),
            grid_spec=pltpu.PrefetchScalarGridSpec(
                num_scalar_prefetch=0,
                grid=(N, num_j),
                in_specs=[
                    pl.BlockSpec((1, C, tile), lambda n, j: (n, 0, j)),
                    pl.BlockSpec((1, C, tile), lambda n, j: (n, 0, j)),
                ],
                out_specs=pl.BlockSpec((1, 1, 1, 1), lambda n, j: (n, j, 0, 0)),
            ),
            compiler_params=cparams,
            cost_estimate=cost,
        )(s, t)

    # Tiny finalization: sum the per-block partials and apply mean over N*H*W.
    return jnp.sum(partials) / jnp.float32(M)


def _reference(student_logits, teacher_soft_targets, eps=1e-8):
    p = jax.nn.softmax(student_logits.astype(jnp.float32), axis=1)
    p = jnp.clip(p, eps, 1.0)
    t = jnp.clip(teacher_soft_targets.astype(jnp.float32), eps, 1.0)
    return jnp.mean(jnp.sum(t * (jnp.log(t) - jnp.log(p)), axis=1))


if __name__ == "__main__":
    key = jax.random.PRNGKey(0)
    k1, k2 = jax.random.split(key)

    N, C, H, W = 2, 4, 16, 16
    student_logits = jax.random.normal(k1, (N, C, H, W), dtype=jnp.float32)
    # Teacher soft targets: a valid probability distribution over channels.
    teacher_soft = jax.nn.softmax(
        jax.random.normal(k2, (N, C, H, W), dtype=jnp.float32), axis=1)

    loss = reverse_kl_loss(student_logits, teacher_soft)
    loss = jax.block_until_ready(loss)

    ref = _reference(student_logits, teacher_soft)
    assert jnp.allclose(loss, ref, rtol=1e-5, atol=1e-6), (loss, ref)

    print("KERNEL_OK")
</pallas_src>

<mosaic_0001>
module attributes {stable_mosaic.version = 11 : i64} {
  func.func @_reverse_kl_kernel(%arg0: i32, %arg1: i32, %arg2: memref<1x4x2x128xf32, #tpu.memory_space<vmem>>, %arg3: memref<1x4x2x128xf32, #tpu.memory_space<vmem>>, %arg4: memref<1x1x1x128xf32, #tpu.memory_space<vmem>>) attributes {dimension_semantics = [#tpu.dimension_semantics<parallel>, #tpu.dimension_semantics<parallel>], iteration_bounds = array<i64: 2, 1>, scalar_prefetch = 0 : i64, scratch_operands = 0 : i64, tpu.core_type = #tpu.core_type<tc>, window_params = [{transform_indices = @transform_0, window_bounds = array<i64: 1, 4, 2, 128>}, {transform_indices = @transform_1, window_bounds = array<i64: 1, 4, 2, 128>}, {transform_indices = @transform_2, window_bounds = array<i64: 1, 1, 1, 128>}]} {
    %c0 = arith.constant 0 : index
    %c0_0 = arith.constant 0 : index
    %c0_1 = arith.constant 0 : index
    %c0_2 = arith.constant 0 : index
    %0 = vector.load %arg2[%c0, %c0_0, %c0_1, %c0_2] : memref<1x4x2x128xf32, #tpu.memory_space<vmem>>, vector<1x4x2x128xf32>
    %1 = vector.shape_cast %0 : vector<1x4x2x128xf32> to vector<4x2x128xf32>
    %c0_3 = arith.constant 0 : index
    %c0_4 = arith.constant 0 : index
    %c0_5 = arith.constant 0 : index
    %c0_6 = arith.constant 0 : index
    %2 = vector.load %arg3[%c0_3, %c0_4, %c0_5, %c0_6] : memref<1x4x2x128xf32, #tpu.memory_space<vmem>>, vector<1x4x2x128xf32>
    %3 = vector.shape_cast %2 : vector<1x4x2x128xf32> to vector<4x2x128xf32>
    %cst = arith.constant dense<0xFF800000> : vector<2x128xf32>
    %4 = vector.multi_reduction <maximumf>, %1, %cst [0] : vector<4x2x128xf32> to vector<2x128xf32>
    %5 = vector.shape_cast %4 : vector<2x128xf32> to vector<1x2x128xf32>
    %6 = vector.broadcast %5 : vector<1x2x128xf32> to vector<4x2x128xf32>
    %7 = arith.subf %1, %6 : vector<4x2x128xf32>
    %8 = math.exp %7 : vector<4x2x128xf32>
    %cst_7 = arith.constant dense<0.000000e+00> : vector<2x128xf32>
    %9 = vector.multi_reduction <add>, %8, %cst_7 [0] : vector<4x2x128xf32> to vector<2x128xf32>
    %10 = vector.shape_cast %9 : vector<2x128xf32> to vector<1x2x128xf32>
    %11 = math.log %10 : vector<1x2x128xf32>
    %12 = vector.broadcast %11 : vector<1x2x128xf32> to vector<4x2x128xf32>
    %13 = arith.subf %7, %12 : vector<4x2x128xf32>
    %cst_8 = arith.constant -18.420681 : f32
    %14 = vector.broadcast %cst_8 : f32 to vector<4x2x128xf32>
    %15 = arith.maximumf %13, %14 : vector<4x2x128xf32>
    %cst_9 = arith.constant 9.99999993E-9 : f32
    %16 = vector.broadcast %cst_9 : f32 to vector<4x2x128xf32>
    %17 = arith.maximumf %3, %16 : vector<4x2x128xf32>
    %18 = math.log %17 : vector<4x2x128xf32>
    %19 = arith.subf %18, %15 : vector<4x2x128xf32>
    %20 = arith.mulf %17, %19 : vector<4x2x128xf32>
    %cst_10 = arith.constant dense<0.000000e+00> : vector<2x128xf32>
    %21 = vector.multi_reduction <add>, %20, %cst_10 [0] : vector<4x2x128xf32> to vector<2x128xf32>
    %cst_11 = arith.constant dense<0.000000e+00> : vector<128xf32>
    %22 = vector.multi_reduction <add>, %21, %cst_11 [0] : vector<2x128xf32> to vector<128xf32>
    %23 = vector.shape_cast %22 : vector<128xf32> to vector<1x1x1x128xf32>
    %c0_12 = arith.constant 0 : index
    %c0_13 = arith.constant 0 : index
    %c0_14 = arith.constant 0 : index
    %c0_15 = arith.constant 0 : index
    %24 = vector.load %arg4[%c0_12, %c0_13, %c0_14, %c0_15] : memref<1x1x1x128xf32, #tpu.memory_space<vmem>>, vector<1x1x1x128xf32>
    tpu.vector_store %arg4[%c0_12, %c0_13, %c0_14, %c0_15], %23 {strides = array<i32>} : memref<1x1x1x128xf32, #tpu.memory_space<vmem>>, vector<1x1x1x128xf32>,
    return
  }
  func.func @transform_0(%arg0: i32, %arg1: i32) -> (i32, i32, i32, i32) {
    %c0_i32 = arith.constant 0 : i32
    %c0_i32_0 = arith.constant 0 : i32
    %c0_i32_1 = arith.constant 0 : i32
    return %arg0, %c0_i32, %arg1, %c0_i32_0 : i32, i32, i32, i32
  }
  func.func @transform_1(%arg0: i32, %arg1: i32) -> (i32, i32, i32, i32) {
    %c0_i32 = arith.constant 0 : i32
    %c0_i32_0 = arith.constant 0 : i32
    %c0_i32_1 = arith.constant 0 : i32
    return %arg0, %c0_i32, %arg1, %c0_i32_0 : i32, i32, i32, i32
  }
  func.func @transform_2(%arg0: i32, %arg1: i32) -> (i32, i32, i32, i32) {
    %c0_i32 = arith.constant 0 : i32
    %c0_i32_0 = arith.constant 0 : i32
    %c0_i32_1 = arith.constant 0 : i32
    return %arg0, %arg1, %c0_i32, %c0_i32_0 : i32, i32, i32, i32
  }
}

</mosaic_0001>

<llo_original>
// kernel: tpu_custom_call.1
$region0: #{tpu_custom_call.1}
  #allocation0 [shape = 'u32[]', space=smem, size = 0x4, offset = 0x4, fixed_abs, tag = 'smem constant byte address 0x4 - core index']
  #allocation1 [shape = 'u32[144,128]{1,0:T(1,128)}', space=vmem, size = 0x12000, scoped, tag = 'internal scratch']
  %s0 = inlined_call_operand.hbm [shape: f32[2,4,2,128], index: 0, kind: input, shape index: {}]
  %s1 = inlined_call_operand.hbm [shape: f32[2,4,2,128], index: 1, kind: input, shape index: {}]
  %s2 = inlined_call_operand.hbm [shape: f32[2,1,1,128], index: 2, kind: output, shape index: {}]
  %s3 = sld [smem:[#allocation0]]
  $region49: #{tpu_custom_call.1} parent=0
    _
  %s5 = ssub.s32 1, %s3
  %s6 = scalar_select 0, %s5, %s3
  $region1: #{tpu_custom_call.1} parent=0
    #allocation2 [shape = 'u8[8192]{0}', space=vmem, size = 0x2000, scoped, tag = 'input window, operand 0']
    #allocation3 [shape = 's32[2]{0}', space=sflag, size = 0x8, scoped, tag = 'scoped memory for tpu_custom_call.1']
    #allocation4 [shape = 's32[2]{0}', space=sflag, size = 0x8, scoped, tag = 'scoped memory for tpu_custom_call.1']
    #allocation5 [shape = 'u8[8192]{0}', space=vmem, size = 0x2000, scoped, tag = 'input window, operand 1']
    #allocation6 [shape = 's32[2]{0}', space=sflag, size = 0x8, scoped, tag = 'scoped memory for tpu_custom_call.1']
    #allocation7 [shape = 'u8[1024]{0}', space=vmem, size = 0x400, scoped, tag = 'output window, operand 0']
    %7 = vsyncpa [#allocation3], 0
    %s8 = scalar_lea.sflag [#allocation3], 1
    %9 = vsyncpa %s8, 0
    %10 = vsyncpa [#allocation6], 0
    %s11 = scalar_lea.sflag [#allocation6], 1
    %12 = vsyncpa %s11, 0
    %13 = vsyncpa [#allocation4], 0
    %s14 = scalar_lea.sflag [#allocation4], 1
    %15 = vsyncpa %s14, 0
    loop: start=0, step=1, limit=4
    $region2: #{tpu_custom_call.1} parent=1 // loop_pre_header
      _
    $region3: #{tpu_custom_call.1} parent=1 // loop_header
      %s17 = sphi 0, %s21
      %p18 = scmp.ge.s32.totalorder %s17, 4
      %s24 = sphi 0, %s36
      %s25 = sphi 0, %s32
      %s26 = sphi 0, %s24
      %s27 = sphi 0, %s25
      %s28 = sphi 0, %s26
      %s29 = sphi 0, %s27
      %s41 = sphi 0, %s43
      %s44 = sphi 0, %s41
      %s45 = sphi 0, %s44
      %s61 = sphi 0, %s45
      %s69 = sphi 0, %s71
      %s72 = sphi 0, %s69
      %s73 = sphi 0, %s72
      %s89 = sphi 0, %s73
      %s97 = sphi 0, %s99
      %s100 = sphi 0, %s97
      %s101 = sphi 0, %s100
      %s117 = sphi 0, %s101
    $region4: #{tpu_custom_call.1} parent=1 // loop_header_branch
      %20 = sbr.rel (%p18) target = $region8
    $region5: #{tpu_custom_call.1} parent=1 // loop_body
      %s22 = ssub.s32 %s17, 1
      %s23 = ssub.s32 %s17, 2
      %s30 = sadd.s32 1, %s25
      %p31 = scmp.ge.s32.totalorder %s30, 1
      %s32 = scalar_select %p31, 0, %s30
      %s33 = sadd.s32 1, %s24
      %s34 = scalar_select %p31, %s33, %s24
      %p35 = scmp.ge.s32.totalorder %s34, 2
      %s36 = scalar_select %p35, 0, %s34
      %s37 = ssub.s32 %s24, %s36
      %s38 = ssub.s32 %s25, %s32
      %s39 = sor.u32 %s37, %s38
      %p40 = scmp.eq.s32.totalorder %s39, 0
      %s42 = sadd.s32 %s41, 1
      %s43 = scalar_select %p40, %s41, %s42
      %p46 = pneg %p40
      %p47 = scmp.eq.s32.totalorder %s17, 1
      %p48 = por %p46, %p47
      %p49 = scmp.ne.s32.totalorder %s41, %s44
      %p50 = scmp.eq.s32.totalorder %s17, 0
      %p51 = por %p49, %p50
      %p52 = scmp.ne.s32.totalorder %s41, %s44
      %p53 = scmp.eq.s32.totalorder %s22, 1
      %p54 = por %p52, %p53
      %p55 = scmp.ne.s32.totalorder %s44, %s45
      %p56 = scmp.eq.s32.totalorder %s22, 0
      %p57 = por %p55, %p56
      %p58 = scmp.ne.s32.totalorder %s44, %s45
      %p59 = scmp.eq.s32.totalorder %s23, 1
      %p60 = por %p58, %p59
      %p62 = scmp.ne.s32.totalorder %s45, %s61
      %p63 = scmp.eq.s32.totalorder %s23, 0
      %p64 = por %p62, %p63
      %s65 = ssub.s32 %s24, %s36
      %s66 = ssub.s32 %s25, %s32
      %s67 = sor.u32 %s65, %s66
      %p68 = scmp.eq.s32.totalorder %s67, 0
      %s70 = sadd.s32 %s69, 1
      %s71 = scalar_select %p68, %s69, %s70
      %p74 = pneg %p68
      %p75 = scmp.eq.s32.totalorder %s17, 1
      %p76 = por %p74, %p75
      %p77 = scmp.ne.s32.totalorder %s69, %s72
      %p78 = scmp.eq.s32.totalorder %s17, 0
      %p79 = por %p77, %p78
      %p80 = scmp.ne.s32.totalorder %s69, %s72
      %p81 = scmp.eq.s32.totalorder %s22, 1
      %p82 = por %p80, %p81
      %p83 = scmp.ne.s32.totalorder %s72, %s73
      %p84 = scmp.eq.s32.totalorder %s22, 0
      %p85 = por %p83, %p84
      %p86 = scmp.ne.s32.totalorder %s72, %s73
      %p87 = scmp.eq.s32.totalorder %s23, 1
      %p88 = por %p86, %p87
      %p90 = scmp.ne.s32.totalorder %s73, %s89
      %p91 = scmp.eq.s32.totalorder %s23, 0
      %p92 = por %p90, %p91
      %s93 = ssub.s32 %s24, %s36
      %s94 = ssub.s32 %s25, %s32
      %s95 = sor.u32 %s93, %s94
      %p96 = scmp.eq.s32.totalorder %s95, 0
      %s98 = sadd.s32 %s97, 1
      %s99 = scalar_select %p96, %s97, %s98
      %p102 = pneg %p96
      %p103 = scmp.eq.s32.totalorder %s17, 1
      %p104 = por %p102, %p103
      %p105 = scmp.ne.s32.totalorder %s97, %s100
      %p106 = scmp.eq.s32.totalorder %s17, 0
      %p107 = por %p105, %p106
      %p108 = scmp.ne.s32.totalorder %s97, %s100
      %p109 = scmp.eq.s32.totalorder %s22, 1
      %p110 = por %p108, %p109
      %p111 = scmp.ne.s32.totalorder %s100, %s101
      %p112 = scmp.eq.s32.totalorder %s22, 0
      %p113 = por %p111, %p112
      %p114 = scmp.ne.s32.totalorder %s100, %s101
      %p115 = scmp.eq.s32.totalorder %s23, 1
      %p116 = por %p114, %p115
      %p118 = scmp.ne.s32.totalorder %s101, %s117
      %p119 = scmp.eq.s32.totalorder %s23, 0
      %p120 = por %p118, %p119
      %p121 = scmp.le.s32.totalorder 1, %s17
      %p122 = scmp.lt.s32.totalorder %s17, 3
      %p123 = pnand %p121, %p122
      %p124 = pneg %p123
      // Predicated region
      $region9: #{tpu_custom_call.1} parent=5 // pred_check
        _
      $region10: #{tpu_custom_call.1} parent=5 // pred_check_branch
        %126 = sbr.rel (%p123) target = $region12
      $region11: #{tpu_custom_call.1} parent=5 // pred_region
        %s127 = ssub.s32 %s17, 1
      $region12: #{tpu_custom_call.1} parent=5 // pred_fallthru
        _
      %p128 = scmp.lt.s32.totalorder %s17, 2
      // Predicated region
      $region13: #{tpu_custom_call.1} parent=5 // pred_check
        %p129 = pneg %p128
      $region14: #{tpu_custom_call.1} parent=5 // pred_check_branch
        %131 = sbr.rel (%p129) target = $region16
      $region15: #{tpu_custom_call.1} parent=5 // pred_region
        // Predicated region
        $region17: #{tpu_custom_call.1} parent=15 // pred_check
          %p132 = pneg %p51
        $region18: #{tpu_custom_call.1} parent=15 // pred_check_branch
          %134 = sbr.rel (%p132) target = $region20
        $region19: #{tpu_custom_call.1} parent=15 // pred_region
          %s135 = sand.u32 %s41, 1
          %s136 = scalar_lea.sflag [#allocation3], %s135
          %s137 = sand.u32 %s41, 1
          %s138 = smul.addr %s137, 8
          %s139 = scalar_lea.vmem [#allocation2], %s138
          %s141 = ssub.s32 128, 128
          %142 = vsyncadd %s136, %s141
          %s143 = smul.addr %s24, 4
          %s144 = sadd.s32 %s25, %s143
          %s145 = smul.addr %s144, 32
          %s146 = scalar_lea.hbm %s0, %s145
          %s147 = sshll.u32 %s139, 4
          %s148 = int_to_ptr.vmem [resolvable:$true] %s147
          %153 = dma.hbm_to_vmem [thread:$0]  %s146, 128, %s148, %s136, 32, 32, 2
        $region20: #{tpu_custom_call.1} parent=15 // pred_fallthru
          _
        // Predicated region
        $region21: #{tpu_custom_call.1} parent=15 // pred_check
          %p154 = pneg %p79
        $region22: #{tpu_custom_call.1} parent=15 // pred_check_branch
          %156 = sbr.rel (%p154) target = $region24
        $region23: #{tpu_custom_call.1} parent=15 // pred_region
          %s157 = sand.u32 %s69, 1
          %s158 = scalar_lea.sflag [#allocation6], %s157
          %s159 = sand.u32 %s69, 1
          %s160 = smul.addr %s159, 8
          %s161 = scalar_lea.vmem [#allocation5], %s160
          %s163 = ssub.s32 128, 128
          %164 = vsyncadd %s158, %s163
          %s165 = smul.addr %s24, 4
          %s166 = sadd.s32 %s25, %s165
          %s167 = smul.addr %s166, 32
          %s168 = scalar_lea.hbm %s1, %s167
          %s169 = sshll.u32 %s161, 4
          %s170 = int_to_ptr.vmem [resolvable:$true] %s169
          %175 = dma.hbm_to_vmem [thread:$0]  %s168, 128, %s170, %s158, 32, 32, 2
        $region24: #{tpu_custom_call.1} parent=15 // pred_fallthru
          _
      $region16: #{tpu_custom_call.1} parent=5 // pred_fallthru
        _
      %p176 = scmp.le.s32.totalorder 1, %s17
      %p177 = scmp.lt.s32.totalorder %s17, 3
      %p178 = pnand %p176, %p177
      %p179 = pneg %p178
      // Predicated region
      $region25: #{tpu_custom_call.1} parent=5 // pred_check
        _
      $region26: #{tpu_custom_call.1} parent=5 // pred_check_branch
        %181 = sbr.rel (%p178) target = $region28
      $region27: #{tpu_custom_call.1} parent=5 // pred_region
        %s182 = ssub.s32 %s17, 1
        %s183 = sand.u32 %s44, 1
        %s184 = scalar_lea.sflag [#allocation3], %s183
        %s185 = sand.u32 %s44, 1
        %s186 = smul.addr %s185, 8
        %s187 = scalar_lea.vmem [#allocation2], %s186
        // Predicated region
        $region29: #{tpu_custom_call.1} parent=27 // pred_check
          %p188 = pneg %p57
        $region30: #{tpu_custom_call.1} parent=27 // pred_check_branch
          %190 = sbr.rel (%p188) target = $region32
        $region31: #{tpu_custom_call.1} parent=27 // pred_region
          %191 = dma.done %s184, 128
        $region32: #{tpu_custom_call.1} parent=27 // pred_fallthru
          _
        %s192 = sand.u32 %s72, 1
        %s193 = scalar_lea.sflag [#allocation6], %s192
        %s194 = sand.u32 %s72, 1
        %s195 = smul.addr %s194, 8
        %s196 = scalar_lea.vmem [#allocation5], %s195
        // Predicated region
        $region33: #{tpu_custom_call.1} parent=27 // pred_check
          %p197 = pneg %p85
        $region34: #{tpu_custom_call.1} parent=27 // pred_check_branch
          %199 = sbr.rel (%p197) target = $region36
        $region35: #{tpu_custom_call.1} parent=27 // pred_region
          %200 = dma.done %s193, 128
        $region36: #{tpu_custom_call.1} parent=27 // pred_fallthru
          _
        %s201 = sand.u32 %s44, 1
        %s202 = scalar_lea.sflag [#allocation3], %s201
        %s203 = sand.u32 %s44, 1
        %s204 = smul.addr %s203, 8
        %s205 = scalar_lea.vmem [#allocation2], %s204
        %p206 = pneg %p57
        %p207 = pneg %p54
        %s208 = sand.u32 %s72, 1
        %s209 = scalar_lea.sflag [#allocation6], %s208
        %s210 = sand.u32 %s72, 1
        %s211 = smul.addr %s210, 8
        %s212 = scalar_lea.vmem [#allocation5], %s211
        %p213 = pneg %p85
        %p214 = pneg %p82
        %p215 = pneg %p113
        %p216 = pneg %p110
        %s217 = sand.u32 %s100, 1
        %s218 = scalar_lea.sflag [#allocation4], %s217
        %s219 = sand.u32 %s100, 1
        %s220 = scalar_lea.vmem [#allocation7], %s219
        %v221 = vld [vmem:[%s187] sm:$0x3]
        %v222 = vld [vmem:[%s187 + $0x2] sm:$0x3]
        %v223 = vld [vmem:[%s187 + $0x4] sm:$0x3]
        %v224 = vld [vmem:[%s187 + $0x6] sm:$0x3]
        %v225 = vld [vmem:[%s196] sm:$0x3]
        %v226 = vld [vmem:[%s196 + $0x2] sm:$0x3]
        %v227 = vld [vmem:[%s196 + $0x4] sm:$0x3]
        %v228 = vld [vmem:[%s196 + $0x6] sm:$0x3]
        %vm229 = vcmask 1041408
        %v230 = vsel %vm229, %v221, -inf
        %v231 = vsel %vm229, %v222, -inf
        %v232 = vsel %vm229, %v223, -inf
        %v233 = vsel %vm229, %v224, -inf
        %v234 = vmax.f32 %v230, %v231
        %v235 = vmax.f32 %v232, %v233
        %v236 = vmax.f32 %v234, %v235
        %v237 = vsub.f32 %v221, %v236
        %v238 = vsub.f32 %v222, %v236
        %v239 = vsub.f32 %v223, %v236
        %v240 = vsub.f32 %v224, %v236
        %v241 = vmul.f32 %v237, 1.442695
        %v242 = vpow.pop %v241
        %v243 = vmul.f32 %v238, 1.442695
        %v244 = vpow.pop %v243
        %v245 = vmul.f32 %v239, 1.442695
        %v246 = vpow.pop %v245
        %v247 = vmul.f32 %v240, 1.442695
        %v248 = vpow.pop %v247
        %v249 = vsel %vm229, %v242, 0.0
        %v250 = vsel %vm229, %v244, 0.0
        %v251 = vadd.f32 %v249, %v250
        %v252 = vsel %vm229, %v246, 0.0
        %v253 = vadd.f32 %v251, %v252
        %v254 = vsel %vm229, %v248, 0.0
        %v255 = vadd.f32 %v253, %v254
        %v256 = vlog2.pop %v255
        %v257 = vmul.f32 %v256, 0.6931472
        %v258 = vsub.f32 %v237, %v257
        %v259 = vsub.f32 %v238, %v257
        %v260 = vsub.f32 %v239, %v257
        %v261 = vsub.f32 %v240, %v257
        %v262 = vmax.f32 %v258, -18.420681
        %v263 = vmax.f32 %v259, -18.420681
        %v264 = vmax.f32 %v260, -18.420681
        %v265 = vmax.f32 %v261, -18.420681
        %v266 = vmax.f32 %v225, 1e-08
        %v267 = vmax.f32 %v226, 1e-08
        %v268 = vmax.f32 %v227, 1e-08
        %v269 = vmax.f32 %v228, 1e-08
        %v270 = vlog2.pop %v266
        %v271 = vmul.f32 %v270, 0.6931472
        %v272 = vlog2.pop %v267
        %v273 = vmul.f32 %v272, 0.6931472
        %v274 = vlog2.pop %v268
        %v275 = vmul.f32 %v274, 0.6931472
        %v276 = vlog2.pop %v269
        %v277 = vmul.f32 %v276, 0.6931472
        %v278 = vsub.f32 %v271, %v262
        %v279 = vsub.f32 %v273, %v263
        %v280 = vsub.f32 %v275, %v264
        %v281 = vsub.f32 %v277, %v265
        %v282 = vmul.f32 %v266, %v278
        %v283 = vmul.f32 %v267, %v279
        %v284 = vmul.f32 %v268, %v280
        %v285 = vmul.f32 %v269, %v281
        %v286 = vsel %vm229, %v282, 0.0
        %v287 = vsel %vm229, %v283, 0.0
        %v288 = vadd.f32 %v286, %v287
        %v289 = vsel %vm229, %v284, 0.0
        %v290 = vadd.f32 %v288, %v289
        %v291 = vsel %vm229, %v285, 0.0
        %v292 = vadd.f32 %v290, %v291
        %v293 = vsel %vm229, %v292, 0.0
        %v294 = vrot.slane %v293, 4
        %v295 = vadd.f32 %v293, %v294
        %v296 = vrot.slane %v295, 2
        %v297 = vadd.f32 %v295, %v296
        %v298 = vrot.slane %v297, 1
        %v299 = vadd.f32 %v297, %v298
        %300 = vst [vmem:[%s220] sm:$0x1] %v299
        %s301 = sand.u32 %s100, 1
        %s302 = scalar_lea.sflag [#allocation4], %s301
        %s303 = sand.u32 %s100, 1
        %s304 = scalar_lea.vmem [#allocation7], %s303
        // Predicated region
        $region37: #{tpu_custom_call.1} parent=27 // pred_check
          %p305 = pneg %p110
        $region38: #{tpu_custom_call.1} parent=27 // pred_check_branch
          %307 = sbr.rel (%p305) target = $region40
        $region39: #{tpu_custom_call.1} parent=27 // pred_region
          %s309 = ssub.s32 16, 16
          %310 = vsyncadd %s302, %s309
          %s311 = sadd.s32 %s27, %s26
          %s312 = smul.addr %s311, 16
          %s313 = scalar_lea.hbm %s2, %s312
          %s315 = sshll.u32 %s304, 4
          %s316 = int_to_ptr.vmem [resolvable:$true] %s315
          %318 = dma.vmem_to_hbm [thread:$0]  %s316, 16, %s313, %s302
        $region40: #{tpu_custom_call.1} parent=27 // pred_fallthru
          _
      $region28: #{tpu_custom_call.1} parent=5 // pred_fallthru
        _
      %p319 = scmp.le.s32.totalorder 2, %s17
      // Predicated region
      $region41: #{tpu_custom_call.1} parent=5 // pred_check
        %p320 = pneg %p319
      $region42: #{tpu_custom_call.1} parent=5 // pred_check_branch
        %322 = sbr.rel (%p320) target = $region44
      $region43: #{tpu_custom_call.1} parent=5 // pred_region
        %s323 = ssub.s32 %s17, 2
        // Predicated region
        $region45: #{tpu_custom_call.1} parent=43 // pred_check
          %p324 = pneg %p116
        $region46: #{tpu_custom_call.1} parent=43 // pred_check_branch
          %326 = sbr.rel (%p324) target = $region48
        $region47: #{tpu_custom_call.1} parent=43 // pred_region
          %s327 = sand.u32 %s101, 1
          %s328 = scalar_lea.sflag [#allocation4], %s327
          %s329 = sand.u32 %s101, 1
          %s330 = scalar_lea.vmem [#allocation7], %s329
          %331 = dma.done %s328, 16
        $region48: #{tpu_custom_call.1} parent=43 // pred_fallthru
          _
      $region44: #{tpu_custom_call.1} parent=5 // pred_fallthru
        _
    $region6: #{tpu_custom_call.1} parent=1 // loop_footer
      %s21 = sadd.s32 1, %s17
    $region7: #{tpu_custom_call.1} parent=1 // loop_footer_branch
      %16 = sbr.rel target = $region3
    $region8: #{tpu_custom_call.1} parent=1 // loop_exit
      _
    %332 = vsyncpa [#allocation3], 1
    %s333 = scalar_lea.sflag [#allocation3], 1
    %334 = vsyncpa %s333, 1
    %335 = vsyncpa [#allocation6], 1
    %s336 = scalar_lea.sflag [#allocation6], 1
    %337 = vsyncpa %s336, 1
    %338 = vsyncpa [#allocation4], 1
    %s339 = scalar_lea.sflag [#allocation4], 1
    %340 = vsyncpa %s339, 1

</llo_original>
